<compile_context>
chip_gen: v7x
topology: tpu7x:2x2x1
jax: 0.10.0
libtpu: 0.0.40
codegen_flags: <defaults>
</compile_context>

<pallas_src>
import functools

import jax
import jax.numpy as jnp
from jax.experimental import pallas as pl
from jax.experimental.pallas import tpu as pltpu


def _round_up(x, m):
    return ((x + m - 1) // m) * m


def _pick_tile(total, unit, max_tile):
    """Largest t = unit*d with d | (total//unit) and t <= max_tile."""
    k = total // unit
    best = 1
    for d in range(1, k + 1):
        if k % d == 0 and unit * d <= max_tile:
            best = d
    return unit * best


def _generator_kernel(x_ref, w1_ref, b1_ref, w2_ref, b2_ref, o_ref, h_ref):
    """Fused generator MLP.

    Grid: (batch tiles i, out_dim tiles j), j innermost.
      h = LeakyReLU_0.1(x @ W1 + b1)   -- computed once per batch tile (j==0)
      o[:, j-tile] = sigmoid(h @ W2[:, j-tile] + b2[j-tile])
    """
    # Recompute the hidden activation only when a new batch tile starts.
    @pl.when(pl.program_id(1) == 0)
    def _():
        x = x_ref[...].astype(jnp.bfloat16)
        h = jnp.dot(x, w1_ref[...], preferred_element_type=jnp.float32)
        h = h + b1_ref[...]                       # broadcast (1, inner_p)
        h = jnp.where(h > 0, h, 0.1 * h)          # LeakyReLU(0.1)
        h_ref[...] = h.astype(h_ref.dtype)        # keep bf16 for the 2nd MXU pass

    y = jnp.dot(h_ref[...], w2_ref[...], preferred_element_type=jnp.float32)
    y = y + b2_ref[...]                           # broadcast (1, tn)
    # Sigmoid: exp on EUP + approximate reciprocal (EUP) -> no VALU divide.
    o_ref[...] = pl.reciprocal(1.0 + jnp.exp(-y), approx=True).astype(o_ref.dtype)


@functools.partial(jax.jit, static_argnames=("im_shape",))
def generator_forward(x, w1, b1, w2, b2, im_shape):
    """x: (N, z_dim) f32 -> (N, C, H, W) f32."""
    n, z_dim = x.shape
    inner = w1.shape[1]
    out_dim = w2.shape[1]

    # Pad feature dims to 128-lane multiples, batch to an 8-sublane multiple.
    # Zero padding keeps the linear algebra exact; padding is sliced off below.
    n_p = _round_up(n, 8)
    z_p = _round_up(z_dim, 128)
    i_p = _round_up(inner, 128)
    o_p = _round_up(out_dim, 128)

    x_p = jnp.pad(x, ((0, n_p - n), (0, z_p - z_dim)))
    w1_p = jnp.pad(w1, ((0, z_p - z_dim), (0, i_p - inner))).astype(jnp.bfloat16)
    b1_p = jnp.pad(b1, ((0, 0), (0, i_p - inner)))
    w2_p = jnp.pad(w2, ((0, i_p - inner), (0, o_p - out_dim))).astype(jnp.bfloat16)
    b2_p = jnp.pad(b2, ((0, 0), (0, o_p - out_dim)))

    tm = _pick_tile(n_p, 8, 256)       # batch tile (sublane multiple)
    tn = _pick_tile(o_p, 128, 2048)    # out_dim tile (lane-dense, VMEM-safe)
    grid = (n_p // tm, o_p // tn)

    flops = 2 * n_p * (z_p * i_p + i_p * o_p)
    bytes_accessed = (x_p.size * 4 + w1_p.size * 2 + b1_p.size * 4
                      + w2_p.size * 2 + b2_p.size * 4 + n_p * o_p * 4)

    out2d = pl.pallas_call(
        _generator_kernel,
        out_shape=jax.ShapeDtypeStruct((n_p, o_p), jnp.float32),
        grid=grid,
        in_specs=[
            pl.BlockSpec((tm, z_p), lambda i, j: (i, 0)),    # x: per batch tile
            pl.BlockSpec((z_p, i_p), lambda i, j: (0, 0)),   # w1: resident
            pl.BlockSpec((1, i_p), lambda i, j: (0, 0)),     # b1: resident
            pl.BlockSpec((i_p, tn), lambda i, j: (0, j)),    # w2: tiled over out
            pl.BlockSpec((1, tn), lambda i, j: (0, j)),      # b2: tiled over out
        ],
        out_specs=pl.BlockSpec((tm, tn), lambda i, j: (i, j)),
        scratch_shapes=[pltpu.VMEM((tm, i_p), jnp.bfloat16)],  # hidden activation
        compiler_params=pltpu.CompilerParams(
            dimension_semantics=("parallel", "arbitrary")),
        cost_estimate=pl.CostEstimate(
            flops=flops, transcendentals=n_p * o_p,
            bytes_accessed=bytes_accessed),
    )(x_p, w1_p, b1_p, w2_p, b2_p)

    out2d = out2d[:n, :out_dim]
    return out2d.reshape((n,) + tuple(im_shape))


def init_generator_params(key, z_dim, inner_feature, im_shape):
    """Deterministic parameter init (shapes match the nn.Linear layers).

    Weights stored as (in_features, out_features) so the kernel computes
    x @ W + b, equivalent to PyTorch's x @ W.T with W of shape (out, in).
    """
    out_dim = int(im_shape[0] * im_shape[1] * im_shape[2])
    k1, k2, k3, k4 = jax.random.split(key, 4)
    w1 = jax.random.normal(k1, (z_dim, inner_feature), jnp.float32) * 0.05
    b1 = jax.random.normal(k2, (1, inner_feature), jnp.float32) * 0.05
    w2 = jax.random.normal(k3, (inner_feature, out_dim), jnp.float32) * 0.05
    b2 = jax.random.normal(k4, (1, out_dim), jnp.float32) * 0.05
    return w1, b1, w2, b2


def reference_forward(x, w1, b1, w2, b2, im_shape):
    # Mirror the kernel's bf16 weight storage so tolerances stay tight.
    w1b = w1.astype(jnp.bfloat16).astype(jnp.float32)
    w2b = w2.astype(jnp.bfloat16).astype(jnp.float32)
    h = x @ w1b + b1
    h = jnp.where(h > 0, h, 0.1 * h)
    y = h @ w2b + b2
    y = jax.nn.sigmoid(y)
    return y.reshape((x.shape[0],) + tuple(im_shape))


if __name__ == "__main__":
    # Module defaults: z_dim=100, inner_feature=256, im_shape=(1, 28, 28).
    batch = 4
    z_dim = 100
    inner_feature = 256
    im_shape = (1, 28, 28)   # (C, H, W) -> out_dim = 784

    key = jax.random.PRNGKey(0)
    kx, kp = jax.random.split(key)
    x = jax.random.normal(kx, (batch, z_dim), jnp.float32)
    w1, b1, w2, b2 = init_generator_params(kp, z_dim, inner_feature, im_shape)

    out = generator_forward(x, w1, b1, w2, b2, im_shape)
    out = jax.block_until_ready(out)

    # Sanity check against a pure-JAX reference (bf16 weights, f32 sigmoid).
    ref = reference_forward(x, w1, b1, w2, b2, im_shape)
    assert out.shape == (batch,) + im_shape, out.shape
    # bf16 activations/weights + approx reciprocal: loosened tolerance.
    assert jnp.allclose(out, ref, atol=1e-2, rtol=1e-2), "mismatch vs reference"

    print("KERNEL_OK")
</pallas_src>

<mosaic_0001>
module attributes {stable_mosaic.version = 11 : i64} {
  func.func @_generator_kernel(%arg0: i32, %arg1: i32, %arg2: memref<8x128xf32, #tpu.memory_space<vmem>>, %arg3: memref<128x256xbf16, #tpu.memory_space<vmem>>, %arg4: memref<1x256xf32, #tpu.memory_space<vmem>>, %arg5: memref<256x896xbf16, #tpu.memory_space<vmem>>, %arg6: memref<1x896xf32, #tpu.memory_space<vmem>>, %arg7: memref<8x896xf32, #tpu.memory_space<vmem>>, %arg8: memref<8x256xbf16, #tpu.memory_space<vmem>>) attributes {dimension_semantics = [#tpu.dimension_semantics<parallel>, #tpu.dimension_semantics<arbitrary>], iteration_bounds = array<i64: 1, 1>, scalar_prefetch = 0 : i64, scratch_operands = 1 : i64, tpu.core_type = #tpu.core_type<tc>, window_params = [{transform_indices = @transform_0, window_bounds = array<i64: 8, 128>}, {pipeline_mode = #tpu.pipeline_mode<synchronous>, transform_indices = @transform_1, window_bounds = array<i64: 128, 256>}, {pipeline_mode = #tpu.pipeline_mode<synchronous>, transform_indices = @transform_2, window_bounds = array<i64: 1, 256>}, {transform_indices = @transform_3, window_bounds = array<i64: 256, 896>}, {transform_indices = @transform_4, window_bounds = array<i64: 1, 896>}, {transform_indices = @transform_5, window_bounds = array<i64: 8, 896>}]} {
    %c0_i32 = arith.constant 0 : i32
    %0 = arith.cmpi eq, %arg1, %c0_i32 : i32
    %1 = arith.extui %0 : i1 to i32
    %c0_i32_0 = arith.constant 0 : i32
    %2 = arith.cmpi ne, %1, %c0_i32_0 : i32
    scf.if %2 {
      %c0_10 = arith.constant 0 : index
      %c0_11 = arith.constant 0 : index
      %16 = vector.load %arg2[%c0_10, %c0_11] : memref<8x128xf32, #tpu.memory_space<vmem>>, vector<8x128xf32>
      %17 = arith.truncf %16 : vector<8x128xf32> to vector<8x128xbf16>
      %c0_12 = arith.constant 0 : index
      %c0_13 = arith.constant 0 : index
      %18 = vector.load %arg3[%c0_12, %c0_13] : memref<128x256xbf16, #tpu.memory_space<vmem>>, vector<128x256xbf16>
      %cst_14 = arith.constant dense<0.000000e+00> : vector<8x256xf32>
      %19 = tpu.matmul %17, %18, %cst_14 {dimension_numbers = #tpu.dot_dimension_numbers<[1], [0], [0], [1], [0, 0, 1, 1], [], []>} : vector<8x128xbf16>, vector<128x256xbf16>, vector<8x256xf32> -> vector<8x256xf32>
      %c0_15 = arith.constant 0 : index
      %c0_16 = arith.constant 0 : index
      %20 = vector.load %arg4[%c0_15, %c0_16] : memref<1x256xf32, #tpu.memory_space<vmem>>, vector<1x256xf32>
      %21 = vector.broadcast %20 : vector<1x256xf32> to vector<8x256xf32>
      %22 = arith.addf %19, %21 : vector<8x256xf32>
      %cst_17 = arith.constant 0.000000e+00 : f32
      %23 = vector.broadcast %cst_17 : f32 to vector<8x256xf32>
      %24 = arith.cmpf ogt, %22, %23 : vector<8x256xf32>
      %cst_18 = arith.constant 1.000000e-01 : f32
      %25 = vector.broadcast %cst_18 : f32 to vector<8x256xf32>
      %26 = arith.mulf %25, %22 : vector<8x256xf32>
      %27 = arith.select %24, %22, %26 : vector<8x256xi1>, vector<8x256xf32>
      %28 = arith.truncf %27 : vector<8x256xf32> to vector<8x256xbf16>
      %c0_19 = arith.constant 0 : index
      %c0_20 = arith.constant 0 : index
      %29 = vector.load %arg8[%c0_19, %c0_20] : memref<8x256xbf16, #tpu.memory_space<vmem>>, vector<8x256xbf16>
      tpu.vector_store %arg8[%c0_19, %c0_20], %28 {strides = array<i32>} : memref<8x256xbf16, #tpu.memory_space<vmem>>, vector<8x256xbf16>,
    } else {
    }
    %c0 = arith.constant 0 : index
    %c0_1 = arith.constant 0 : index
    %3 = vector.load %arg8[%c0, %c0_1] : memref<8x256xbf16, #tpu.memory_space<vmem>>, vector<8x256xbf16>
    %c0_2 = arith.constant 0 : index
    %c0_3 = arith.constant 0 : index
    %4 = vector.load %arg5[%c0_2, %c0_3] : memref<256x896xbf16, #tpu.memory_space<vmem>>, vector<256x896xbf16>
    %cst = arith.constant dense<0.000000e+00> : vector<8x896xf32>
    %5 = tpu.matmul %3, %4, %cst {dimension_numbers = #tpu.dot_dimension_numbers<[1], [0], [0], [1], [0, 0, 1, 1], [], []>} : vector<8x256xbf16>, vector<256x896xbf16>, vector<8x896xf32> -> vector<8x896xf32>
    %c0_4 = arith.constant 0 : index
    %c0_5 = arith.constant 0 : index
    %6 = vector.load %arg6[%c0_4, %c0_5] : memref<1x896xf32, #tpu.memory_space<vmem>>, vector<1x896xf32>
    %7 = vector.broadcast %6 : vector<1x896xf32> to vector<8x896xf32>
    %8 = arith.addf %5, %7 : vector<8x896xf32>
    %cst_6 = arith.constant 0.000000e+00 : f32
    %9 = vector.broadcast %cst_6 : f32 to vector<8x896xf32>
    %10 = arith.subf %9, %8 : vector<8x896xf32>
    %11 = math.exp %10 : vector<8x896xf32>
    %cst_7 = arith.constant 1.000000e+00 : f32
    %12 = vector.broadcast %cst_7 : f32 to vector<8x896xf32>
    %13 = arith.addf %12, %11 : vector<8x896xf32>
    %14 = tpu.reciprocal %13 {approx = true} : vector<8x896xf32> -> vector<8x896xf32>
    %c0_8 = arith.constant 0 : index
    %c0_9 = arith.constant 0 : index
    %15 = vector.load %arg7[%c0_8, %c0_9] : memref<8x896xf32, #tpu.memory_space<vmem>>, vector<8x896xf32>
    tpu.vector_store %arg7[%c0_8, %c0_9], %14 {strides = array<i32>} : memref<8x896xf32, #tpu.memory_space<vmem>>, vector<8x896xf32>,
    return
  }
  func.func @transform_0(%arg0: i32, %arg1: i32) -> (i32, i32) {
    %c0_i32 = arith.constant 0 : i32
    %c0_i32_0 = arith.constant 0 : i32
    return %arg0, %c0_i32 : i32, i32
  }
  func.func @transform_1(%arg0: i32, %arg1: i32) -> (i32, i32) {
    %c0_i32 = arith.constant 0 : i32
    %c0_i32_0 = arith.constant 0 : i32
    %c0_i32_1 = arith.constant 0 : i32
    return %c0_i32, %c0_i32_0 : i32, i32
  }
  func.func @transform_2(%arg0: i32, %arg1: i32) -> (i32, i32) {
    %c0_i32 = arith.constant 0 : i32
    %c0_i32_0 = arith.constant 0 : i32
    %c0_i32_1 = arith.constant 0 : i32
    return %c0_i32, %c0_i32_0 : i32, i32
  }
  func.func @transform_3(%arg0: i32, %arg1: i32) -> (i32, i32) {
    %c0_i32 = arith.constant 0 : i32
    %c0_i32_0 = arith.constant 0 : i32
    return %c0_i32, %arg1 : i32, i32
  }
  func.func @transform_4(%arg0: i32, %arg1: i32) -> (i32, i32) {
    %c0_i32 = arith.constant 0 : i32
    %c0_i32_0 = arith.constant 0 : i32
    return %c0_i32, %arg1 : i32, i32
  }
  func.func @transform_5(%arg0: i32, %arg1: i32) -> (i32, i32) {
    %c0_i32 = arith.constant 0 : i32
    return %arg0, %arg1 : i32, i32
  }
}

</mosaic_0001>

<llo_original>
// kernel: generator_forward.1
$region0: #{generator_forward.1}
  #allocation0 [shape = 'u32[]', space=smem, size = 0x4, offset = 0x4, fixed_abs, tag = 'smem constant byte address 0x4 - core index']
  #allocation1 [shape = 'u32[144,128]{1,0:T(1,128)}', space=vmem, size = 0x12000, scoped, tag = 'internal scratch']
  #allocation2 [shape = 'bf16[8,256]{1,0:T(8,128)(2,1)}', space=vmem, size = 0x1000, scoped, tag = 'scratch operand']
  %s0 = inlined_call_operand.vmem [shape: f32[8,128], index: 0, kind: input, shape index: {}]
  %s1 = inlined_call_operand.vmem [shape: bf16[128,256], index: 1, kind: input, shape index: {}]
  %s2 = inlined_call_operand.vmem [shape: f32[1,256], index: 2, kind: input, shape index: {}]
  %s3 = inlined_call_operand.vmem [shape: bf16[256,896], index: 3, kind: input, shape index: {}]
  %s4 = inlined_call_operand.vmem [shape: f32[1,896], index: 4, kind: input, shape index: {}]
  %s5 = inlined_call_operand.vmem [shape: f32[8,896], index: 5, kind: output, shape index: {}]
  %s6 = sld [smem:[#allocation0]]
  $region34: #{generator_forward.1} parent=0
    _
  %s8 = ssub.s32 1, %s6
  %s9 = scalar_select 0, %s8, %s6
  // Predicated region
  $region2: #{generator_forward.1} parent=0 // pred_check
    _
  $region3: #{generator_forward.1} parent=0 // pred_check_branch
    %11 = sbr.rel (0) target = $region5
  $region4: #{generator_forward.1} parent=0 // pred_region
    _
  $region5: #{generator_forward.1} parent=0 // pred_fallthru
    _
  // Predicated region
  $region6: #{generator_forward.1} parent=0 // pred_check
    _
  $region7: #{generator_forward.1} parent=0 // pred_check_branch
    %13 = sbr.rel (0) target = $region9
  $region8: #{generator_forward.1} parent=0 // pred_region
    _
  $region9: #{generator_forward.1} parent=0 // pred_fallthru
    _
  // Predicated region
  $region10: #{generator_forward.1} parent=0 // pred_check
    _
  $region11: #{generator_forward.1} parent=0 // pred_check_branch
    %15 = sbr.rel (0) target = $region13
  $region12: #{generator_forward.1} parent=0 // pred_region
    _
  $region13: #{generator_forward.1} parent=0 // pred_fallthru
    _
  // Predicated region
  $region14: #{generator_forward.1} parent=0 // pred_check
    _
  $region15: #{generator_forward.1} parent=0 // pred_check_branch
    %17 = sbr.rel (0) target = $region17
  $region16: #{generator_forward.1} parent=0 // pred_region
    _
  $region17: #{generator_forward.1} parent=0 // pred_fallthru
    _
  // Predicated region
  $region18: #{generator_forward.1} parent=0 // pred_check
    _
  $region19: #{generator_forward.1} parent=0 // pred_check_branch
    %19 = sbr.rel (0) target = $region21
  $region20: #{generator_forward.1} parent=0 // pred_region
    _
  $region21: #{generator_forward.1} parent=0 // pred_fallthru
    _
  %p21 = scmp.eq.s32.totalorder 0, 0
  // Predicated region
  $region22: #{generator_forward.1} parent=0 // pred_check
    %p22 = pneg %p21
  $region23: #{generator_forward.1} parent=0 // pred_check_branch
    %24 = sbr.rel (%p22) target = $region25
  $region24: #{generator_forward.1} parent=0 // pred_region
    %v25 = vld [vmem:[%s0] sm:$0xff]
    %v26 = vpack.c.bf16 %v25, %v25
    %v27 = vld [vmem:[%s1] sm:$0xff]
    %v28 = vld [vmem:[%s1 + $0x8] sm:$0xff]
    %v29 = vld [vmem:[%s1 + $0x10] sm:$0xff]
    %v30 = vld [vmem:[%s1 + $0x18] sm:$0xff]
    %v31 = vld [vmem:[%s1 + $0x20] sm:$0xff]
    %v32 = vld [vmem:[%s1 + $0x28] sm:$0xff]
    %v33 = vld [vmem:[%s1 + $0x30] sm:$0xff]
    %v34 = vld [vmem:[%s1 + $0x38] sm:$0xff]
    %v35 = vld [vmem:[%s1 + $0x40] sm:$0xff]
    %v36 = vld [vmem:[%s1 + $0x48] sm:$0xff]
    %v37 = vld [vmem:[%s1 + $0x50] sm:$0xff]
    %v38 = vld [vmem:[%s1 + $0x58] sm:$0xff]
    %v39 = vld [vmem:[%s1 + $0x60] sm:$0xff]
    %v40 = vld [vmem:[%s1 + $0x68] sm:$0xff]
    %v41 = vld [vmem:[%s1 + $0x70] sm:$0xff]
    %v42 = vld [vmem:[%s1 + $0x78] sm:$0xff]
    %v43 = vld [vmem:[%s2] sm:$0x3]
    %v45 = vlaneseq
    %v46 = vshrl.u32 %v45, 7
    %v47 = vsub.s32 0, %v46
    %v48 = vrot.slane %v43, %v47
    %v49 = vlaneseq
    %v50 = vshrl.u32 %v49, 7
    %v51 = vsub.s32 1, %v50
    %v52 = vrot.slane %v43, %v51
    %v71 = vunpack.c.l.b16 %v27
    %v72 = vunpack.c.h.b16 %v27
    %v73 = vunpack.c.l.b16 %v28
    %v74 = vunpack.c.h.b16 %v28
    %v75 = vunpack.c.l.b16 %v29
    %v76 = vunpack.c.h.b16 %v29
    %v77 = vunpack.c.l.b16 %v30
    %v78 = vunpack.c.h.b16 %v30
    %v79 = vunpack.c.l.b16 %v31
    %v80 = vunpack.c.h.b16 %v31
    %v81 = vunpack.c.l.b16 %v32
    %v82 = vunpack.c.h.b16 %v32
    %v83 = vunpack.c.l.b16 %v33
    %v84 = vunpack.c.h.b16 %v33
    %v85 = vunpack.c.l.b16 %v34
    %v86 = vunpack.c.h.b16 %v34
    %v87 = vunpack.c.l.b16 %v35
    %v88 = vunpack.c.h.b16 %v35
    %v89 = vunpack.c.l.b16 %v36
    %v90 = vunpack.c.h.b16 %v36
    %v91 = vunpack.c.l.b16 %v37
    %v92 = vunpack.c.h.b16 %v37
    %v93 = vunpack.c.l.b16 %v38
    %v94 = vunpack.c.h.b16 %v38
    %v95 = vunpack.c.l.b16 %v39
    %v96 = vunpack.c.h.b16 %v39
    %v97 = vunpack.c.l.b16 %v40
    %v98 = vunpack.c.h.b16 %v40
    %v99 = vunpack.c.l.b16 %v41
    %v100 = vunpack.c.h.b16 %v41
    %v101 = vunpack.c.l.b16 %v42
    %v102 = vunpack.c.h.b16 %v42
    %v103 = vpack.c.b16 %v73, %v71
    %v104 = vpack.c.b16 %v74, %v72
    %v105 = vpack.c.b16 %v77, %v75
    %v106 = vpack.c.b16 %v78, %v76
    %v107 = vpack.c.b16 %v81, %v79
    %v108 = vpack.c.b16 %v82, %v80
    %v109 = vpack.c.b16 %v85, %v83
    %v110 = vpack.c.b16 %v86, %v84
    %v111 = vpack.c.b16 %v89, %v87
    %v112 = vpack.c.b16 %v90, %v88
    %v113 = vpack.c.b16 %v93, %v91
    %v114 = vpack.c.b16 %v94, %v92
    %v115 = vpack.c.b16 %v97, %v95
    %v116 = vpack.c.b16 %v98, %v96
    %v117 = vpack.c.b16 %v101, %v99
    %v118 = vpack.c.b16 %v102, %v100
    %135 = vmatprep.subr.bf16.mxu0 %v104
    %136 = vmatpush1.bf16.msra.mxu0 %v103
    %137 = vmatprep.subr.bf16.mxu0 %v106
    %138 = vmatpush1.bf16.msra.mxu0 %v105
    %139 = vmatprep.subr.bf16.mxu0 %v108
    %140 = vmatpush1.bf16.msra.mxu0 %v107
    %141 = vmatprep.subr.bf16.mxu0 %v110
    %142 = vmatpush1.bf16.msra.mxu0 %v109
    %143 = vmatprep.subr.bf16.mxu0 %v112
    %144 = vmatpush1.bf16.msra.mxu0 %v111
    %145 = vmatprep.subr.bf16.mxu0 %v114
    %146 = vmatpush1.bf16.msra.mxu0 %v113
    %147 = vmatprep.subr.bf16.mxu0 %v116
    %148 = vmatpush1.bf16.msra.mxu0 %v115
    %149 = vmatprep.subr.bf16.mxu0 %v118
    %150 = vmatpush1.bf16.msra.mxu0 %v117
    %151 = vmatprep.subr.bf16.mxu0 0
    %152 = vmatpush1.bf16.msra.mxu0 0
    %153 = vmatprep.subr.bf16.mxu0 0
    %154 = vmatpush1.bf16.msra.mxu0 0
    %155 = vmatprep.subr.bf16.mxu0 0
    %156 = vmatpush1.bf16.msra.mxu0 0
    %157 = vmatprep.subr.bf16.mxu0 0
    %158 = vmatpush1.bf16.msra.mxu0 0
    %159 = vmatprep.subr.bf16.mxu0 0
    %160 = vmatpush1.bf16.msra.mxu0 0
    %161 = vmatprep.subr.bf16.mxu0 0
    %162 = vmatpush1.bf16.msra.mxu0 0
    %163 = vmatprep.subr.bf16.mxu0 0
    %164 = vmatpush1.bf16.msra.mxu0 0
    %165 = vmatprep.subr.bf16.mxu0 0
    %166 = vmatpush1.bf16.msra.mxu0 0
    %167 = vmatprep.mubr.bf16.mxu0 0
    %168 = vmatmul.mubr.bf16.gmra.mrb[0].mxu0 %v26
    %v169 = vpop.f32.mrb[0].mxu0
    %v170 = vadd.f32 %v48, %v169
    %v171 = vpop.f32.mrb[0].mxu0
    %v172 = vadd.f32 %v52, %v171
    %v173 = vpop.f32.mrb[0].mxu0
    %v174 = vpop.f32.mrb[0].mxu0
    %175 = vdwg.mxu0
    %vm176 = vcmp.gt.f32.partialorder %v170, 0.0
    %vm177 = vcmp.gt.f32.partialorder %v172, 0.0
    %v178 = vmul.f32 %v170, 0.1
    %v179 = vmul.f32 %v172, 0.1
    %v180 = vsel %vm176, %v170, %v178
    %v181 = vsel %vm177, %v172, %v179
    %v182 = vpack.c.bf16 %v180, %v180
    %v183 = vpack.c.bf16 %v181, %v181
    %v186 = vunpack.c.l.b16 %v182
    %v187 = vunpack.c.l.b16 %v183
    %v188 = vpack.c.b16 %v187, %v186
    %190 = vst [vmem:[#allocation2] sm:$0xff] %v188
  $region25: #{generator_forward.1} parent=0 // pred_fallthru
    _
  %v191 = vld [vmem:[#allocation2] sm:$0xff]
  %v192 = vld [vmem:[%s3] sm:$0xff]
  %v193 = vld [vmem:[%s3 + $0x8] sm:$0xff]
  %v194 = vld [vmem:[%s3 + $0x10] sm:$0xff]
  %v195 = vld [vmem:[%s3 + $0x18] sm:$0xf]
  %v196 = vld [vmem:[%s3 + $0x1c] sm:$0xff]
  %v197 = vld [vmem:[%s3 + $0x24] sm:$0xff]
  %v198 = vld [vmem:[%s3 + $0x2c] sm:$0xff]
  %v199 = vld [vmem:[%s3 + $0x34] sm:$0xf]
  %v200 = vld [vmem:[%s3 + $0x38] sm:$0xff]
  %v201 = vld [vmem:[%s3 + $0x40] sm:$0xff]
  %v202 = vld [vmem:[%s3 + $0x48] sm:$0xff]
  %v203 = vld [vmem:[%s3 + $0x50] sm:$0xf]
  %v204 = vld [vmem:[%s3 + $0x54] sm:$0xff]
  %v205 = vld [vmem:[%s3 + $0x5c] sm:$0xff]
  %v206 = vld [vmem:[%s3 + $0x64] sm:$0xff]
  %v207 = vld [vmem:[%s3 + $0x6c] sm:$0xf]
  %v208 = vld [vmem:[%s3 + $0x70] sm:$0xff]
  %v209 = vld [vmem:[%s3 + $0x78] sm:$0xff]
  %v210 = vld [vmem:[%s3 + $0x80] sm:$0xff]
  %v211 = vld [vmem:[%s3 + $0x88] sm:$0xf]
  %v212 = vld [vmem:[%s3 + $0x8c] sm:$0xff]
  %v213 = vld [vmem:[%s3 + $0x94] sm:$0xff]
  %v214 = vld [vmem:[%s3 + $0x9c] sm:$0xff]
  %v215 = vld [vmem:[%s3 + $0xa4] sm:$0xf]
  %v216 = vld [vmem:[%s3 + $0xa8] sm:$0xff]
  %v217 = vld [vmem:[%s3 + $0xb0] sm:$0xff]
  %v218 = vld [vmem:[%s3 + $0xb8] sm:$0xff]
  %v219 = vld [vmem:[%s3 + $0xc0] sm:$0xf]
  %v220 = vld [vmem:[%s3 + $0xc4] sm:$0xff]
  %v221 = vld [vmem:[%s3 + $0xcc] sm:$0xff]
  %v222 = vld [vmem:[%s3 + $0xd4] sm:$0xff]
  %v223 = vld [vmem:[%s3 + $0xdc] sm:$0xf]
  %v224 = vld [vmem:[%s3 + $0xe0] sm:$0xff]
  %v225 = vld [vmem:[%s3 + $0xe8] sm:$0xff]
  %v226 = vld [vmem:[%s3 + $0xf0] sm:$0xff]
  %v227 = vld [vmem:[%s3 + $0xf8] sm:$0xf]
  %v228 = vld [vmem:[%s3 + $0xfc] sm:$0xff]
  %v229 = vld [vmem:[%s3 + $0x104] sm:$0xff]
  %v230 = vld [vmem:[%s3 + $0x10c] sm:$0xff]
  %v231 = vld [vmem:[%s3 + $0x114] sm:$0xf]
  %v232 = vld [vmem:[%s3 + $0x118] sm:$0xff]
  %v233 = vld [vmem:[%s3 + $0x120] sm:$0xff]
  %v234 = vld [vmem:[%s3 + $0x128] sm:$0xff]
  %v235 = vld [vmem:[%s3 + $0x130] sm:$0xf]
  %v236 = vld [vmem:[%s3 + $0x134] sm:$0xff]
  %v237 = vld [vmem:[%s3 + $0x13c] sm:$0xff]
  %v238 = vld [vmem:[%s3 + $0x144] sm:$0xff]
  %v239 = vld [vmem:[%s3 + $0x14c] sm:$0xf]
  %v240 = vld [vmem:[%s3 + $0x150] sm:$0xff]
  %v241 = vld [vmem:[%s3 + $0x158] sm:$0xff]
  %v242 = vld [vmem:[%s3 + $0x160] sm:$0xff]
  %v243 = vld [vmem:[%s3 + $0x168] sm:$0xf]
  %v244 = vld [vmem:[%s3 + $0x16c] sm:$0xff]
  %v245 = vld [vmem:[%s3 + $0x174] sm:$0xff]
  %v246 = vld [vmem:[%s3 + $0x17c] sm:$0xff]
  %v247 = vld [vmem:[%s3 + $0x184] sm:$0xf]
  %v248 = vld [vmem:[%s3 + $0x188] sm:$0xff]
  %v249 = vld [vmem:[%s3 + $0x190] sm:$0xff]
  %v250 = vld [vmem:[%s3 + $0x198] sm:$0xff]
  %v251 = vld [vmem:[%s3 + $0x1a0] sm:$0xf]
  %v252 = vld [vmem:[%s3 + $0x1a4] sm:$0xff]
  %v253 = vld [vmem:[%s3 + $0x1ac] sm:$0xff]
  %v254 = vld [vmem:[%s3 + $0x1b4] sm:$0xff]
  %v255 = vld [vmem:[%s3 + $0x1bc] sm:$0xf]
  %v256 = vld [vmem:[%s3 + $0x1c0] sm:$0xff]
  %v257 = vld [vmem:[%s3 + $0x1c8] sm:$0xff]
  %v258 = vld [vmem:[%s3 + $0x1d0] sm:$0xff]
  %v259 = vld [vmem:[%s3 + $0x1d8] sm:$0xf]
  %v260 = vld [vmem:[%s3 + $0x1dc] sm:$0xff]
  %v261 = vld [vmem:[%s3 + $0x1e4] sm:$0xff]
  %v262 = vld [vmem:[%s3 + $0x1ec] sm:$0xff]
  %v263 = vld [vmem:[%s3 + $0x1f4] sm:$0xf]
  %v264 = vld [vmem:[%s3 + $0x1f8] sm:$0xff]
  %v265 = vld [vmem:[%s3 + $0x200] sm:$0xff]
  %v266 = vld [vmem:[%s3 + $0x208] sm:$0xff]
  %v267 = vld [vmem:[%s3 + $0x210] sm:$0xf]
  %v268 = vld [vmem:[%s3 + $0x214] sm:$0xff]
  %v269 = vld [vmem:[%s3 + $0x21c] sm:$0xff]
  %v270 = vld [vmem:[%s3 + $0x224] sm:$0xff]
  %v271 = vld [vmem:[%s3 + $0x22c] sm:$0xf]
  %v272 = vld [vmem:[%s3 + $0x230] sm:$0xff]
  %v273 = vld [vmem:[%s3 + $0x238] sm:$0xff]
  %v274 = vld [vmem:[%s3 + $0x240] sm:$0xff]
  %v275 = vld [vmem:[%s3 + $0x248] sm:$0xf]
  %v276 = vld [vmem:[%s3 + $0x24c] sm:$0xff]
  %v277 = vld [vmem:[%s3 + $0x254] sm:$0xff]
  %v278 = vld [vmem:[%s3 + $0x25c] sm:$0xff]
  %v279 = vld [vmem:[%s3 + $0x264] sm:$0xf]
  %v280 = vld [vmem:[%s3 + $0x268] sm:$0xff]
  %v281 = vld [vmem:[%s3 + $0x270] sm:$0xff]
  %v282 = vld [vmem:[%s3 + $0x278] sm:$0xff]
  %v283 = vld [vmem:[%s3 + $0x280] sm:$0xf]
  %v284 = vld [vmem:[%s3 + $0x284] sm:$0xff]
  %v285 = vld [vmem:[%s3 + $0x28c] sm:$0xff]
  %v286 = vld [vmem:[%s3 + $0x294] sm:$0xff]
  %v287 = vld [vmem:[%s3 + $0x29c] sm:$0xf]
  %v288 = vld [vmem:[%s3 + $0x2a0] sm:$0xff]
  %v289 = vld [vmem:[%s3 + $0x2a8] sm:$0xff]
  %v290 = vld [vmem:[%s3 + $0x2b0] sm:$0xff]
  %v291 = vld [vmem:[%s3 + $0x2b8] sm:$0xf]
  %v292 = vld [vmem:[%s3 + $0x2bc] sm:$0xff]
  %v293 = vld [vmem:[%s3 + $0x2c4] sm:$0xff]
  %v294 = vld [vmem:[%s3 + $0x2cc] sm:$0xff]
  %v295 = vld [vmem:[%s3 + $0x2d4] sm:$0xf]
  %v296 = vld [vmem:[%s3 + $0x2d8] sm:$0xff]
  %v297 = vld [vmem:[%s3 + $0x2e0] sm:$0xff]
  %v298 = vld [vmem:[%s3 + $0x2e8] sm:$0xff]
  %v299 = vld [vmem:[%s3 + $0x2f0] sm:$0xf]
  %v300 = vld [vmem:[%s3 + $0x2f4] sm:$0xff]
  %v301 = vld [vmem:[%s3 + $0x2fc] sm:$0xff]
  %v302 = vld [vmem:[%s3 + $0x304] sm:$0xff]
  %v303 = vld [vmem:[%s3 + $0x30c] sm:$0xf]
  %v304 = vld [vmem:[%s3 + $0x310] sm:$0xff]
  %v305 = vld [vmem:[%s3 + $0x318] sm:$0xff]
  %v306 = vld [vmem:[%s3 + $0x320] sm:$0xff]
  %v307 = vld [vmem:[%s3 + $0x328] sm:$0xf]
  %v308 = vld [vmem:[%s3 + $0x32c] sm:$0xff]
  %v309 = vld [vmem:[%s3 + $0x334] sm:$0xff]
  %v310 = vld [vmem:[%s3 + $0x33c] sm:$0xff]
  %v311 = vld [vmem:[%s3 + $0x344] sm:$0xf]
  %v312 = vld [vmem:[%s3 + $0x348] sm:$0xff]
  %v313 = vld [vmem:[%s3 + $0x350] sm:$0xff]
  %v314 = vld [vmem:[%s3 + $0x358] sm:$0xff]
  %v315 = vld [vmem:[%s3 + $0x360] sm:$0xf]
  %v316 = vld [vmem:[%s3 + $0x364] sm:$0xff]
  %v317 = vld [vmem:[%s3 + $0x36c] sm:$0xff]
  %v318 = vld [vmem:[%s3 + $0x374] sm:$0xff]
  %v319 = vld [vmem:[%s3 + $0x37c] sm:$0xf]
  %v320 = vld [vmem:[%s4] sm:$0xff]
  %v322 = vlaneseq
  %v323 = vshrl.u32 %v322, 7
  %v324 = vsub.s32 0, %v323
  %v325 = vrot.slane %v320, %v324
  %v326 = vlaneseq
  %v327 = vshrl.u32 %v326, 7
  %v328 = vsub.s32 1, %v327
  %v329 = vrot.slane %v320, %v328
  %v330 = vlaneseq
  %v331 = vshrl.u32 %v330, 7
  %v332 = vsub.s32 2, %v331
  %v333 = vrot.slane %v320, %v332
  %v334 = vlaneseq
  %v335 = vshrl.u32 %v334, 7
  %v336 = vsub.s32 3, %v335
  %v337 = vrot.slane %v320, %v336
  %v338 = vlaneseq
  %v339 = vshrl.u32 %v338, 7
  %v340 = vsub.s32 4, %v339
  %v341 = vrot.slane %v320, %v340
  %v342 = vlaneseq
  %v343 = vshrl.u32 %v342, 7
  %v344 = vsub.s32 5, %v343
  %v345 = vrot.slane %v320, %v344
  %v346 = vlaneseq
  %v347 = vshrl.u32 %v346, 7
  %v348 = vsub.s32 6, %v347
  %v349 = vrot.slane %v320, %v348
  %v358 = vunpack.c.l.b16 %v191
  %v359 = vunpack.c.h.b16 %v191
  %v360 = vpack.c.b16 %v358, %v358
  %v361 = vpack.c.b16 %v359, %v359
  %v492 = vunpack.c.l.b16 %v192
  %v493 = vunpack.c.h.b16 %v192
  %v494 = vunpack.c.l.b16 %v193
  %v495 = vunpack.c.h.b16 %v193
  %v496 = vunpack.c.l.b16 %v194
  %v497 = vunpack.c.h.b16 %v194
  %v498 = vunpack.c.l.b16 %v195
  %v499 = vunpack.c.l.b16 %v196
  %v500 = vunpack.c.h.b16 %v196
  %v501 = vunpack.c.l.b16 %v197
  %v502 = vunpack.c.h.b16 %v197
  %v503 = vunpack.c.l.b16 %v198
  %v504 = vunpack.c.h.b16 %v198
  %v505 = vunpack.c.l.b16 %v199
  %v506 = vunpack.c.l.b16 %v200
  %v507 = vunpack.c.h.b16 %v200
  %v508 = vunpack.c.l.b16 %v201
  %v509 = vunpack.c.h.b16 %v201
  %v510 = vunpack.c.l.b16 %v202
  %v511 = vunpack.c.h.b16 %v202
  %v512 = vunpack.c.l.b16 %v203
  %v513 = vunpack.c.l.b16 %v204
  %v514 = vunpack.c.h.b16 %v204
  %v515 = vunpack.c.l.b16 %v205
  %v516 = vunpack.c.h.b16 %v205
  %v517 = vunpack.c.l.b16 %v206
  %v518 = vunpack.c.h.b16 %v206
  %v519 = vunpack.c.l.b16 %v207
  %v520 = vunpack.c.l.b16 %v208
  %v521 = vunpack.c.h.b16 %v208
  %v522 = vunpack.c.l.b16 %v209
  %v523 = vunpack.c.h.b16 %v209
  %v524 = vunpack.c.l.b16 %v210
  %v525 = vunpack.c.h.b16 %v210
  %v526 = vunpack.c.l.b16 %v211
  %v527 = vunpack.c.l.b16 %v212
  %v528 = vunpack.c.h.b16 %v212
  %v529 = vunpack.c.l.b16 %v213
  %v530 = vunpack.c.h.b16 %v213
  %v531 = vunpack.c.l.b16 %v214
  %v532 = vunpack.c.h.b16 %v214
  %v533 = vunpack.c.l.b16 %v215
  %v534 = vunpack.c.l.b16 %v216
  %v535 = vunpack.c.h.b16 %v216
  %v536 = vunpack.c.l.b16 %v217
  %v537 = vunpack.c.h.b16 %v217
  %v538 = vunpack.c.l.b16 %v218
  %v539 = vunpack.c.h.b16 %v218
  %v540 = vunpack.c.l.b16 %v219
  %v541 = vunpack.c.l.b16 %v220
  %v542 = vunpack.c.h.b16 %v220
  %v543 = vunpack.c.l.b16 %v221
  %v544 = vunpack.c.h.b16 %v221
  %v545 = vunpack.c.l.b16 %v222
  %v546 = vunpack.c.h.b16 %v222
  %v547 = vunpack.c.l.b16 %v223
  %v548 = vunpack.c.l.b16 %v224
  %v549 = vunpack.c.h.b16 %v224
  %v550 = vunpack.c.l.b16 %v225
  %v551 = vunpack.c.h.b16 %v225
  %v552 = vunpack.c.l.b16 %v226
  %v553 = vunpack.c.h.b16 %v226
  %v554 = vunpack.c.l.b16 %v227
  %v555 = vunpack.c.l.b16 %v228
  %v556 = vunpack.c.h.b16 %v228
  %v557 = vunpack.c.l.b16 %v229
  %v558 = vunpack.c.h.b16 %v229
  %v559 = vunpack.c.l.b16 %v230
  %v560 = vunpack.c.h.b16 %v230
  %v561 = vunpack.c.l.b16 %v231
  %v562 = vunpack.c.l.b16 %v232
  %v563 = vunpack.c.h.b16 %v232
  %v564 = vunpack.c.l.b16 %v233
  %v565 = vunpack.c.h.b16 %v233
  %v566 = vunpack.c.l.b16 %v234
  %v567 = vunpack.c.h.b16 %v234
  %v568 = vunpack.c.l.b16 %v235
  %v569 = vunpack.c.l.b16 %v236
  %v570 = vunpack.c.h.b16 %v236
  %v571 = vunpack.c.l.b16 %v237
  %v572 = vunpack.c.h.b16 %v237
  %v573 = vunpack.c.l.b16 %v238
  %v574 = vunpack.c.h.b16 %v238
  %v575 = vunpack.c.l.b16 %v239
  %v576 = vunpack.c.l.b16 %v240
  %v577 = vunpack.c.h.b16 %v240
  %v578 = vunpack.c.l.b16 %v241
  %v579 = vunpack.c.h.b16 %v241
  %v580 = vunpack.c.l.b16 %v242
  %v581 = vunpack.c.h.b16 %v242
  %v582 = vunpack.c.l.b16 %v243
  %v583 = vunpack.c.l.b16 %v244
  %v584 = vunpack.c.h.b16 %v244
  %v585 = vunpack.c.l.b16 %v245
  %v586 = vunpack.c.h.b16 %v245
  %v587 = vunpack.c.l.b16 %v246
  %v588 = vunpack.c.h.b16 %v246
  %v589 = vunpack.c.l.b16 %v247
  %v590 = vunpack.c.l.b16 %v248
  %v591 = vunpack.c.h.b16 %v248
  %v592 = vunpack.c.l.b16 %v249
  %v593 = vunpack.c.h.b16 %v249
  %v594 = vunpack.c.l.b16 %v250
  %v595 = vunpack.c.h.b16 %v250
  %v596 = vunpack.c.l.b16 %v251
  %v597 = vunpack.c.l.b16 %v252
  %v598 = vunpack.c.h.b16 %v252
  %v599 = vunpack.c.l.b16 %v253
  %v600 = vunpack.c.h.b16 %v253
  %v601 = vunpack.c.l.b16 %v254
  %v602 = vunpack.c.h.b16 %v254
  %v603 = vunpack.c.l.b16 %v255
  %v604 = vunpack.c.l.b16 %v256
  %v605 = vunpack.c.h.b16 %v256
  %v606 = vunpack.c.l.b16 %v257
  %v607 = vunpack.c.h.b16 %v257
  %v608 = vunpack.c.l.b16 %v258
  %v609 = vunpack.c.h.b16 %v258
  %v610 = vunpack.c.l.b16 %v259
  %v611 = vunpack.c.l.b16 %v260
  %v612 = vunpack.c.h.b16 %v260
  %v613 = vunpack.c.l.b16 %v261
  %v614 = vunpack.c.h.b16 %v261
  %v615 = vunpack.c.l.b16 %v262
  %v616 = vunpack.c.h.b16 %v262
  %v617 = vunpack.c.l.b16 %v263
  %v618 = vunpack.c.l.b16 %v264
  %v619 = vunpack.c.h.b16 %v264
  %v620 = vunpack.c.l.b16 %v265
  %v621 = vunpack.c.h.b16 %v265
  %v622 = vunpack.c.l.b16 %v266
  %v623 = vunpack.c.h.b16 %v266
  %v624 = vunpack.c.l.b16 %v267
  %v625 = vunpack.c.l.b16 %v268
  %v626 = vunpack.c.h.b16 %v268
  %v627 = vunpack.c.l.b16 %v269
  %v628 = vunpack.c.h.b16 %v269
  %v629 = vunpack.c.l.b16 %v270
  %v630 = vunpack.c.h.b16 %v270
  %v631 = vunpack.c.l.b16 %v271
  %v632 = vunpack.c.l.b16 %v272
  %v633 = vunpack.c.h.b16 %v272
  %v634 = vunpack.c.l.b16 %v273
  %v635 = vunpack.c.h.b16 %v273
  %v636 = vunpack.c.l.b16 %v274
  %v637 = vunpack.c.h.b16 %v274
  %v638 = vunpack.c.l.b16 %v275
  %v639 = vunpack.c.l.b16 %v276
  %v640 = vunpack.c.h.b16 %v276
  %v641 = vunpack.c.l.b16 %v277
  %v642 = vunpack.c.h.b16 %v277
  %v643 = vunpack.c.l.b16 %v278
  %v644 = vunpack.c.h.b16 %v278
  %v645 = vunpack.c.l.b16 %v279
  %v646 = vunpack.c.l.b16 %v280
  %v647 = vunpack.c.h.b16 %v280
  %v648 = vunpack.c.l.b16 %v281
  %v649 = vunpack.c.h.b16 %v281
  %v650 = vunpack.c.l.b16 %v282
  %v651 = vunpack.c.h.b16 %v282
  %v652 = vunpack.c.l.b16 %v283
  %v653 = vunpack.c.l.b16 %v284
  %v654 = vunpack.c.h.b16 %v284
  %v655 = vunpack.c.l.b16 %v285
  %v656 = vunpack.c.h.b16 %v285
  %v657 = vunpack.c.l.b16 %v286
  %v658 = vunpack.c.h.b16 %v286
  %v659 = vunpack.c.l.b16 %v287
  %v660 = vunpack.c.l.b16 %v288
  %v661 = vunpack.c.h.b16 %v288
  %v662 = vunpack.c.l.b16 %v289
  %v663 = vunpack.c.h.b16 %v289
  %v664 = vunpack.c.l.b16 %v290
  %v665 = vunpack.c.h.b16 %v290
  %v666 = vunpack.c.l.b16 %v291
  %v667 = vunpack.c.l.b16 %v292
  %v668 = vunpack.c.h.b16 %v292
  %v669 = vunpack.c.l.b16 %v293
  %v670 = vunpack.c.h.b16 %v293
  %v671 = vunpack.c.l.b16 %v294
  %v672 = vunpack.c.h.b16 %v294
  %v673 = vunpack.c.l.b16 %v295
  %v674 = vunpack.c.l.b16 %v296
  %v675 = vunpack.c.h.b16 %v296
  %v676 = vunpack.c.l.b16 %v297
  %v677 = vunpack.c.h.b16 %v297
  %v678 = vunpack.c.l.b16 %v298
  %v679 = vunpack.c.h.b16 %v298
  %v680 = vunpack.c.l.b16 %v299
  %v681 = vunpack.c.l.b16 %v300
  %v682 = vunpack.c.h.b16 %v300
  %v683 = vunpack.c.l.b16 %v301
  %v684 = vunpack.c.h.b16 %v301
  %v685 = vunpack.c.l.b16 %v302
  %v686 = vunpack.c.h.b16 %v302
  %v687 = vunpack.c.l.b16 %v303
  %v688 = vunpack.c.l.b16 %v304
  %v689 = vunpack.c.h.b16 %v304
  %v690 = vunpack.c.l.b16 %v305
  %v691 = vunpack.c.h.b16 %v305
  %v692 = vunpack.c.l.b16 %v306
  %v693 = vunpack.c.h.b16 %v306
  %v694 = vunpack.c.l.b16 %v307
  %v695 = vunpack.c.l.b16 %v308
  %v696 = vunpack.c.h.b16 %v308
  %v697 = vunpack.c.l.b16 %v309
  %v698 = vunpack.c.h.b16 %v309
  %v699 = vunpack.c.l.b16 %v310
  %v700 = vunpack.c.h.b16 %v310
  %v701 = vunpack.c.l.b16 %v311
  %v702 = vunpack.c.l.b16 %v312
  %v703 = vunpack.c.h.b16 %v312
  %v704 = vunpack.c.l.b16 %v313
  %v705 = vunpack.c.h.b16 %v313
  %v706 = vunpack.c.l.b16 %v314
  %v707 = vunpack.c.h.b16 %v314
  %v708 = vunpack.c.l.b16 %v315
  %v709 = vunpack.c.l.b16 %v316
  %v710 = vunpack.c.h.b16 %v316
  %v711 = vunpack.c.l.b16 %v317
  %v712 = vunpack.c.h.b16 %v317
  %v713 = vunpack.c.l.b16 %v318
  %v714 = vunpack.c.h.b16 %v318
  %v715 = vunpack.c.l.b16 %v319
  %v716 = vpack.c.b16 %v499, %v492
  %v717 = vpack.c.b16 %v500, %v493
  %v718 = vpack.c.b16 %v501, %v494
  %v719 = vpack.c.b16 %v502, %v495
  %v720 = vpack.c.b16 %v503, %v496
  %v721 = vpack.c.b16 %v504, %v497
  %v722 = vpack.c.b16 %v505, %v498
  %v723 = vpack.c.b16 %v513, %v506
  %v724 = vpack.c.b16 %v514, %v507
  %v725 = vpack.c.b16 %v515, %v508
  %v726 = vpack.c.b16 %v516, %v509
  %v727 = vpack.c.b16 %v517, %v510
  %v728 = vpack.c.b16 %v518, %v511
  %v729 = vpack.c.b16 %v519, %v512
  %v730 = vpack.c.b16 %v527, %v520
  %v731 = vpack.c.b16 %v528, %v521
  %v732 = vpack.c.b16 %v529, %v522
  %v733 = vpack.c.b16 %v530, %v523
  %v734 = vpack.c.b16 %v531, %v524
  %v735 = vpack.c.b16 %v532, %v525
  %v736 = vpack.c.b16 %v533, %v526
  %v737 = vpack.c.b16 %v541, %v534
  %v738 = vpack.c.b16 %v542, %v535
  %v739 = vpack.c.b16 %v543, %v536
  %v740 = vpack.c.b16 %v544, %v537
  %v741 = vpack.c.b16 %v545, %v538
  %v742 = vpack.c.b16 %v546, %v539
  %v743 = vpack.c.b16 %v547, %v540
  %v744 = vpack.c.b16 %v555, %v548
  %v745 = vpack.c.b16 %v556, %v549
  %v746 = vpack.c.b16 %v557, %v550
  %v747 = vpack.c.b16 %v558, %v551
  %v748 = vpack.c.b16 %v559, %v552
  %v749 = vpack.c.b16 %v560, %v553
  %v750 = vpack.c.b16 %v561, %v554
  %v751 = vpack.c.b16 %v569, %v562
  %v752 = vpack.c.b16 %v570, %v563
  %v753 = vpack.c.b16 %v571, %v564
  %v754 = vpack.c.b16 %v572, %v565
  %v755 = vpack.c.b16 %v573, %v566
  %v756 = vpack.c.b16 %v574, %v567
  %v757 = vpack.c.b16 %v575, %v568
  %v758 = vpack.c.b16 %v583, %v576
  %v759 = vpack.c.b16 %v584, %v577
  %v760 = vpack.c.b16 %v585, %v578
  %v761 = vpack.c.b16 %v586, %v579
  %v762 = vpack.c.b16 %v587, %v580
  %v763 = vpack.c.b16 %v588, %v581
  %v764 = vpack.c.b16 %v589, %v582
  %v765 = vpack.c.b16 %v597, %v590
  %v766 = vpack.c.b16 %v598, %v591
  %v767 = vpack.c.b16 %v599, %v592
  %v768 = vpack.c.b16 %v600, %v593
  %v769 = vpack.c.b16 %v601, %v594
  %v770 = vpack.c.b16 %v602, %v595
  %v771 = vpack.c.b16 %v603, %v596
  %v772 = vpack.c.b16 %v611, %v604
  %v773 = vpack.c.b16 %v612, %v605
  %v774 = vpack.c.b16 %v613, %v606
  %v775 = vpack.c.b16 %v614, %v607
  %v776 = vpack.c.b16 %v615, %v608
  %v777 = vpack.c.b16 %v616, %v609
  %v778 = vpack.c.b16 %v617, %v610
  %v779 = vpack.c.b16 %v625, %v618
  %v780 = vpack.c.b16 %v626, %v619
  %v781 = vpack.c.b16 %v627, %v620
  %v782 = vpack.c.b16 %v628, %v621
  %v783 = vpack.c.b16 %v629, %v622
  %v784 = vpack.c.b16 %v630, %v623
  %v785 = vpack.c.b16 %v631, %v624
  %v786 = vpack.c.b16 %v639, %v632
  %v787 = vpack.c.b16 %v640, %v633
  %v788 = vpack.c.b16 %v641, %v634
  %v789 = vpack.c.b16 %v642, %v635
  %v790 = vpack.c.b16 %v643, %v636
  %v791 = vpack.c.b16 %v644, %v637
  %v792 = vpack.c.b16 %v645, %v638
  %v793 = vpack.c.b16 %v653, %v646
  %v794 = vpack.c.b16 %v654, %v647
  %v795 = vpack.c.b16 %v655, %v648
  %v796 = vpack.c.b16 %v656, %v649
  %v797 = vpack.c.b16 %v657, %v650
  %v798 = vpack.c.b16 %v658, %v651
  %v799 = vpack.c.b16 %v659, %v652
  %v800 = vpack.c.b16 %v667, %v660
  %v801 = vpack.c.b16 %v668, %v661
  %v802 = vpack.c.b16 %v669, %v662
  %v803 = vpack.c.b16 %v670, %v663
  %v804 = vpack.c.b16 %v671, %v664
  %v805 = vpack.c.b16 %v672, %v665
  %v806 = vpack.c.b16 %v673, %v666
  %v807 = vpack.c.b16 %v681, %v674
  %v808 = vpack.c.b16 %v682, %v675
  %v809 = vpack.c.b16 %v683, %v676
  %v810 = vpack.c.b16 %v684, %v677
  %v811 = vpack.c.b16 %v685, %v678
  %v812 = vpack.c.b16 %v686, %v679
  %v813 = vpack.c.b16 %v687, %v680
  %v814 = vpack.c.b16 %v695, %v688
  %v815 = vpack.c.b16 %v696, %v689
  %v816 = vpack.c.b16 %v697, %v690
  %v817 = vpack.c.b16 %v698, %v691
  %v818 = vpack.c.b16 %v699, %v692
  %v819 = vpack.c.b16 %v700, %v693
  %v820 = vpack.c.b16 %v701, %v694
  %v821 = vpack.c.b16 %v709, %v702
  %v822 = vpack.c.b16 %v710, %v703
  %v823 = vpack.c.b16 %v711, %v704
  %v824 = vpack.c.b16 %v712, %v705
  %v825 = vpack.c.b16 %v713, %v706
  %v826 = vpack.c.b16 %v714, %v707
  %v827 = vpack.c.b16 %v715, %v708
  %940 = vmatprep.subr.bf16.mxu0 %v717
  %941 = vmatpush1.bf16.msra.mxu0 %v716
  %942 = vmatprep.subr.bf16.mxu0 %v724
  %943 = vmatpush1.bf16.msra.mxu0 %v723
  %944 = vmatprep.subr.bf16.mxu0 %v731
  %945 = vmatpush1.bf16.msra.mxu0 %v730
  %946 = vmatprep.subr.bf16.mxu0 %v738
  %947 = vmatpush1.bf16.msra.mxu0 %v737
  %948 = vmatprep.subr.bf16.mxu0 %v745
  %949 = vmatpush1.bf16.msra.mxu0 %v744
  %950 = vmatprep.subr.bf16.mxu0 %v752
  %951 = vmatpush1.bf16.msra.mxu0 %v751
  %952 = vmatprep.subr.bf16.mxu0 %v759
  %953 = vmatpush1.bf16.msra.mxu0 %v758
  %954 = vmatprep.subr.bf16.mxu0 %v766
  %955 = vmatpush1.bf16.msra.mxu0 %v765
  %956 = vmatprep.subr.bf16.mxu0 %v773
  %957 = vmatpush1.bf16.msra.mxu0 %v772
  %958 = vmatprep.subr.bf16.mxu0 %v780
  %959 = vmatpush1.bf16.msra.mxu0 %v779
  %960 = vmatprep.subr.bf16.mxu0 %v787
  %961 = vmatpush1.bf16.msra.mxu0 %v786
  %962 = vmatprep.subr.bf16.mxu0 %v794
  %963 = vmatpush1.bf16.msra.mxu0 %v793
  %964 = vmatprep.subr.bf16.mxu0 %v801
  %965 = vmatpush1.bf16.msra.mxu0 %v800
  %966 = vmatprep.subr.bf16.mxu0 %v808
  %967 = vmatpush1.bf16.msra.mxu0 %v807
  %968 = vmatprep.subr.bf16.mxu0 %v815
  %969 = vmatpush1.bf16.msra.mxu0 %v814
  %970 = vmatprep.subr.bf16.mxu0 %v822
  %971 = vmatpush1.bf16.msra.mxu0 %v821
  %972 = vmatprep.mubr.bf16.mxu0 %v361
  %973 = vmatmul.mubr.bf16.gmra.mrb[0].mxu0 %v360
  %v974 = vpop.f32.mrb[0].mxu0
  %v975 = vadd.f32 %v325, %v974
  %v976 = vpop.f32.mrb[0].mxu0
  %v977 = vadd.f32 %v329, %v976
  %v978 = vpop.f32.mrb[0].mxu0
  %v979 = vpop.f32.mrb[0].mxu0
  %980 = vdwg.mxu0
  %981 = vmatprep.subr.bf16.mxu0 %v719
  %982 = vmatpush1.bf16.msra.mxu0 %v718
  %983 = vmatprep.subr.bf16.mxu0 %v726
  %984 = vmatpush1.bf16.msra.mxu0 %v725
  %985 = vmatprep.subr.bf16.mxu0 %v733
  %986 = vmatpush1.bf16.msra.mxu0 %v732
  %987 = vmatprep.subr.bf16.mxu0 %v740
  %988 = vmatpush1.bf16.msra.mxu0 %v739
  %989 = vmatprep.subr.bf16.mxu0 %v747
  %990 = vmatpush1.bf16.msra.mxu0 %v746
  %991 = vmatprep.subr.bf16.mxu0 %v754
  %992 = vmatpush1.bf16.msra.mxu0 %v753
  %993 = vmatprep.subr.bf16.mxu0 %v761
  %994 = vmatpush1.bf16.msra.mxu0 %v760
  %995 = vmatprep.subr.bf16.mxu0 %v768
  %996 = vmatpush1.bf16.msra.mxu0 %v767
  %997 = vmatprep.subr.bf16.mxu0 %v775
  %998 = vmatpush1.bf16.msra.mxu0 %v774
  %999 = vmatprep.subr.bf16.mxu0 %v782
  %1000 = vmatpush1.bf16.msra.mxu0 %v781
  %1001 = vmatprep.subr.bf16.mxu0 %v789
  %1002 = vmatpush1.bf16.msra.mxu0 %v788
  %1003 = vmatprep.subr.bf16.mxu0 %v796
  %1004 = vmatpush1.bf16.msra.mxu0 %v795
  %1005 = vmatprep.subr.bf16.mxu0 %v803
  %1006 = vmatpush1.bf16.msra.mxu0 %v802
  %1007 = vmatprep.subr.bf16.mxu0 %v810
  %1008 = vmatpush1.bf16.msra.mxu0 %v809
  %1009 = vmatprep.subr.bf16.mxu0 %v817
  %1010 = vmatpush1.bf16.msra.mxu0 %v816
  %1011 = vmatprep.subr.bf16.mxu0 %v824
  %1012 = vmatpush1.bf16.msra.mxu0 %v823
  %1013 = vmatprep.mubr.bf16.mxu0 %v361
  %1014 = vmatmul.mubr.bf16.gmra.mrb[0].mxu0 %v360
  %v1015 = vpop.f32.mrb[0].mxu0
  %v1016 = vadd.f32 %v333, %v1015
  %v1017 = vpop.f32.mrb[0].mxu0
  %v1018 = vadd.f32 %v337, %v1017
  %v1019 = vpop.f32.mrb[0].mxu0
  %v1020 = vpop.f32.mrb[0].mxu0
  %1021 = vdwg.mxu0
  %1022 = vmatprep.subr.bf16.mxu0 %v721
  %1023 = vmatpush1.bf16.msra.mxu0 %v720
  %1024 = vmatprep.subr.bf16.mxu0 %v728
  %1025 = vmatpush1.bf16.msra.mxu0 %v727
  %1026 = vmatprep.subr.bf16.mxu0 %v735
  %1027 = vmatpush1.bf16.msra.mxu0 %v734
  %1028 = vmatprep.subr.bf16.mxu0 %v742
  %1029 = vmatpush1.bf16.msra.mxu0 %v741
  %1030 = vmatprep.subr.bf16.mxu0 %v749
  %1031 = vmatpush1.bf16.msra.mxu0 %v748
  %1032 = vmatprep.subr.bf16.mxu0 %v756
  %1033 = vmatpush1.bf16.msra.mxu0 %v755
  %1034 = vmatprep.subr.bf16.mxu0 %v763
  %1035 = vmatpush1.bf16.msra.mxu0 %v762
  %1036 = vmatprep.subr.bf16.mxu0 %v770
  %1037 = vmatpush1.bf16.msra.mxu0 %v769
  %1038 = vmatprep.subr.bf16.mxu0 %v777
  %1039 = vmatpush1.bf16.msra.mxu0 %v776
  %1040 = vmatprep.subr.bf16.mxu0 %v784
  %1041 = vmatpush1.bf16.msra.mxu0 %v783
  %1042 = vmatprep.subr.bf16.mxu0 %v791
  %1043 = vmatpush1.bf16.msra.mxu0 %v790
  %1044 = vmatprep.subr.bf16.mxu0 %v798
  %1045 = vmatpush1.bf16.msra.mxu0 %v797
  %1046 = vmatprep.subr.bf16.mxu0 %v805
  %1047 = vmatpush1.bf16.msra.mxu0 %v804
  %1048 = vmatprep.subr.bf16.mxu0 %v812
  %1049 = vmatpush1.bf16.msra.mxu0 %v811
  %1050 = vmatprep.subr.bf16.mxu0 %v819
  %1051 = vmatpush1.bf16.msra.mxu0 %v818
  %1052 = vmatprep.subr.bf16.mxu0 %v826
  %1053 = vmatpush1.bf16.msra.mxu0 %v825
  %1054 = vmatprep.mubr.bf16.mxu0 %v361
  %1055 = vmatmul.mubr.bf16.gmra.mrb[0].mxu0 %v360
  %v1056 = vpop.f32.mrb[0].mxu0
  %v1057 = vadd.f32 %v341, %v1056
  %v1058 = vpop.f32.mrb[0].mxu0
  %v1059 = vadd.f32 %v345, %v1058
  %v1060 = vpop.f32.mrb[0].mxu0
  %v1061 = vpop.f32.mrb[0].mxu0
  %1062 = vdwg.mxu0
  %1063 = vmatprep.subr.bf16.mxu0 0
  %1064 = vmatpush1.bf16.msra.mxu0 %v722
  %1065 = vmatprep.subr.bf16.mxu0 0
  %1066 = vmatpush1.bf16.msra.mxu0 %v729
  %1067 = vmatprep.subr.bf16.mxu0 0
  %1068 = vmatpush1.bf16.msra.mxu0 %v736
  %1069 = vmatprep.subr.bf16.mxu0 0
  %1070 = vmatpush1.bf16.msra.mxu0 %v743
  %1071 = vmatprep.subr.bf16.mxu0 0
  %1072 = vmatpush1.bf16.msra.mxu0 %v750
  %1073 = vmatprep.subr.bf16.mxu0 0
  %1074 = vmatpush1.bf16.msra.mxu0 %v757
  %1075 = vmatprep.subr.bf16.mxu0 0
  %1076 = vmatpush1.bf16.msra.mxu0 %v764
  %1077 = vmatprep.subr.bf16.mxu0 0
  %1078 = vmatpush1.bf16.msra.mxu0 %v771
  %1079 = vmatprep.subr.bf16.mxu0 0
  %1080 = vmatpush1.bf16.msra.mxu0 %v778
  %1081 = vmatprep.subr.bf16.mxu0 0
  %1082 = vmatpush1.bf16.msra.mxu0 %v785
  %1083 = vmatprep.subr.bf16.mxu0 0
  %1084 = vmatpush1.bf16.msra.mxu0 %v792
  %1085 = vmatprep.subr.bf16.mxu0 0
  %1086 = vmatpush1.bf16.msra.mxu0 %v799
  %1087 = vmatprep.subr.bf16.mxu0 0
  %1088 = vmatpush1.bf16.msra.mxu0 %v806
  %1089 = vmatprep.subr.bf16.mxu0 0
  %1090 = vmatpush1.bf16.msra.mxu0 %v813
  %1091 = vmatprep.subr.bf16.mxu0 0
  %1092 = vmatpush1.bf16.msra.mxu0 %v820
  %1093 = vmatprep.subr.bf16.mxu0 0
  %1094 = vmatpush1.bf16.msra.mxu0 %v827
  %1095 = vmatprep.mubr.bf16.mxu0 %v361
  %1096 = vmatmul.mubr.bf16.gmra.mrb[0].mxu0 %v360
  %v1097 = vpop.f32.mrb[0].mxu0
  %v1098 = vadd.f32 %v349, %v1097
  %v1099 = vpop.f32.mrb[0].mxu0
  %v1100 = vpop.f32.mrb[0].mxu0
  %v1101 = vpop.f32.mrb[0].mxu0
  %1102 = vdwg.mxu0
  %v1103 = vsub.f32 0.0, %v975
  %v1104 = vsub.f32 0.0, %v977
  %v1105 = vsub.f32 0.0, %v1016
  %v1106 = vsub.f32 0.0, %v1018
  %v1107 = vsub.f32 0.0, %v1057
  %v1108 = vsub.f32 0.0, %v1059
  %v1109 = vsub.f32 0.0, %v1098
  %v1110 = vmul.f32 %v1103, 1.442695
  %v1111 = vpow.pop %v1110
  %v1112 = vmul.f32 %v1104, 1.442695
  %v1113 = vpow.pop %v1112
  %v1114 = vmul.f32 %v1105, 1.442695
  %v1115 = vpow.pop %v1114
  %v1116 = vmul.f32 %v1106, 1.442695
  %v1117 = vpow.pop %v1116
  %v1118 = vmul.f32 %v1107, 1.442695
  %v1119 = vpow.pop %v1118
  %v1120 = vmul.f32 %v1108, 1.442695
  %v1121 = vpow.pop %v1120
  %v1122 = vmul.f32 %v1109, 1.442695
  %v1123 = vpow.pop %v1122
  %v1124 = vadd.f32 %v1111, 1.0
  %v1125 = vadd.f32 %v1113, 1.0
  %v1126 = vadd.f32 %v1115, 1.0
  %v1127 = vadd.f32 %v1117, 1.0
  %v1128 = vadd.f32 %v1119, 1.0
  %v1129 = vadd.f32 %v1121, 1.0
  %v1130 = vadd.f32 %v1123, 1.0
  %v1131 = vrcp.pop %v1124
  %v1132 = vrcp.pop %v1125
  %v1133 = vrcp.pop %v1126
  %v1134 = vrcp.pop %v1127
  %v1135 = vrcp.pop %v1128
  %v1136 = vrcp.pop %v1129
  %v1137 = vrcp.pop %v1130
  %1138 = vst [vmem:[%s5] sm:$0xff] %v1131
  %1139 = vst [vmem:[%s5 + $0x8] sm:$0xff] %v1132
  %1140 = vst [vmem:[%s5 + $0x10] sm:$0xff] %v1133
  %1141 = vst [vmem:[%s5 + $0x18] sm:$0xff] %v1134
  %1142 = vst [vmem:[%s5 + $0x20] sm:$0xff] %v1135
  %1143 = vst [vmem:[%s5 + $0x28] sm:$0xff] %v1136
  %1144 = vst [vmem:[%s5 + $0x30] sm:$0xff] %v1137
  // Predicated region
  $region26: #{generator_forward.1} parent=0 // pred_check
    _
  $region27: #{generator_forward.1} parent=0 // pred_check_branch
    %1146 = sbr.rel (0) target = $region29
  $region28: #{generator_forward.1} parent=0 // pred_region
    _
  $region29: #{generator_forward.1} parent=0 // pred_fallthru
    _
  // Predicated region
  $region30: #{generator_forward.1} parent=0 // pred_check
    _
  $region31: #{generator_forward.1} parent=0 // pred_check_branch
    %1148 = sbr.rel (0) target = $region33
  $region32: #{generator_forward.1} parent=0 // pred_region
    _
  $region33: #{generator_forward.1} parent=0 // pred_fallthru
    _

</llo_original>
